<compile_context>
chip_gen: v7x
topology: tpu7x:2x2x1
jax: 0.10.0
libtpu: 0.0.40
codegen_flags: <defaults>
</compile_context>

<pallas_src>
import functools

import jax
import jax.numpy as jnp
from jax.experimental import pallas as pl
from jax.experimental.pallas import tpu as pltpu

_LANES = 128
_DEFAULT_BLOCK_BYTES = 4 * 1024 * 1024
_DEFAULT_VMEM_LIMIT = 32 * 1024 * 1024
# Cap for the rank-1 (ragged) path: even under a pessimistic 8x sublane-padded
# VMEM layout, 4 buffers x 8 x 1 MiB = 32 MiB stays within every vmem limit we
# request, and 1 MiB contiguous tiles are already ~85% of HBM roofline.
_RAGGED_MAX_BLOCK_BYTES = 1 * 1024 * 1024


def _clamp_kernel(x_ref, o_ref, *, min_val, max_val):
    x = x_ref[...]
    lo = jnp.asarray(min_val, x.dtype)
    hi = jnp.asarray(max_val, x.dtype)
    o_ref[...] = jnp.clip(x, lo, hi)


def _sublane_multiple(dtype) -> int:
    # Sub-32-bit dtypes pack along sublanes: f32 -> 8, bf16/f16 -> 16, int8 -> 32.
    itemsize = jnp.dtype(dtype).itemsize
    return max(8, 32 // max(1, itemsize))


def _round_up(n, m):
    return ((n + m - 1) // m) * m


@functools.lru_cache(maxsize=None)
def _chip_config():
    """Returns (target_block_bytes, vmem_limit_bytes) for the local TPU generation."""
    try:
        vmem_cap = int(pltpu.get_tpu_info().vmem_capacity_bytes)
    except Exception:
        # Unknown chip / query unavailable: conservative, known-good config.
        return _DEFAULT_BLOCK_BYTES, _DEFAULT_VMEM_LIMIT
    if vmem_cap <= 64 * 1024 * 1024:
        # v7x-like: fast HBM makes per-step overhead a ~12-15% tax at 4 MiB, so
        # use 8 MiB tiles; 2 bufs x (in+out) x 8 MiB = 32 MiB needs a 48 MiB limit
        # (leaves headroom inside the 64 MiB/TC VMEM).
        return 8 * 1024 * 1024, 48 * 1024 * 1024
    # v5e / v6e: 128 MiB VMEM -> 8 MiB tiles with a 64 MiB limit are free headroom-wise.
    return 8 * 1024 * 1024, 64 * 1024 * 1024


def _prefer_even_grid(extent, tile, quantum):
    """If the grid count is small and odd, shrink the tile so it becomes even
    (balances v7x's two TensorCores under dimension_semantics=('parallel',))."""
    n = pl.cdiv(extent, tile)
    if n % 2 == 0 or n < 3 or n > 9:
        return tile
    for n_target in (n + 1, n + 3):
        cand = _round_up(pl.cdiv(extent, n_target), quantum)
        if cand >= quantum and pl.cdiv(extent, cand) % 2 == 0:
            return cand
    return tile


def _clamp_call(x_arr, block_shape, grid, *, min_val, max_val,
                vmem_limit_bytes, alias_input):
    ndim = len(block_shape)
    if ndim == 1:
        index_map = lambda i: (i,)
    else:
        index_map = lambda i: (i, 0)
    total = int(x_arr.size)
    itemsize = jnp.dtype(x_arr.dtype).itemsize
    kernel = functools.partial(_clamp_kernel, min_val=min_val, max_val=max_val)
    return pl.pallas_call(
        kernel,
        out_shape=jax.ShapeDtypeStruct(x_arr.shape, x_arr.dtype),
        grid_spec=pltpu.PrefetchScalarGridSpec(
            num_scalar_prefetch=0,
            grid=grid,
            in_specs=[pl.BlockSpec(block_shape, index_map)],
            out_specs=pl.BlockSpec(block_shape, index_map),
        ),
        compiler_params=pltpu.CompilerParams(
            dimension_semantics=("parallel",),
            vmem_limit_bytes=vmem_limit_bytes,
        ),
        cost_estimate=pl.CostEstimate(
            flops=2 * total,
            transcendentals=0,
            bytes_accessed=2 * total * itemsize,
        ),
        # In-place when the input is donated / a dead intermediate under jit.
        input_output_aliases=({0: 0} if alias_input else {}),
    )(x_arr)


def clamp_pallas(x, min_val=0.0, max_val=1.0, *,
                 target_block_bytes=None,
                 vmem_limit_bytes=None,
                 pallas_min_elems=64 * 1024,
                 alias_input=True):
    """Elementwise clamp(x, min_val, max_val) via a Pallas TPU kernel.

    Works for arbitrary input shapes/dtypes.  min_val/max_val are cast to the
    input dtype (exact for the module's 0/1 bounds).
    """
    orig_shape = x.shape
    orig_dtype = x.dtype
    total = int(x.size)

    if total == 0:
        return x

    # Tiny activations: kernel launch + layout plumbing would dominate;
    # a fused XLA clip is strictly faster there.
    if total < pallas_min_elems:
        return jnp.clip(x, jnp.asarray(min_val, orig_dtype),
                        jnp.asarray(max_val, orig_dtype))

    cfg_block, cfg_vmem = _chip_config()
    if target_block_bytes is None:
        target_block_bytes = cfg_block
    if vmem_limit_bytes is None:
        vmem_limit_bytes = cfg_vmem

    itemsize = jnp.dtype(orig_dtype).itemsize
    sub = _sublane_multiple(orig_dtype)
    x_flat = x.reshape(-1)  # contiguous reshape: metadata only, no HBM copy

    if total % _LANES == 0:
        # ---- Aligned path: lane-dense [rows, 128] slab, row-tiled. ----
        rows = total // _LANES
        mult = sub
        if rows <= mult:
            tile_rows = rows                      # single full-extent block (legal)
        else:
            desired = min(max(1, target_block_bytes // (_LANES * itemsize)),
                          pl.cdiv(rows, 2))       # >=2 steps when possible (megacore)
            tile_rows = max(mult, (desired // mult) * mult)
            tile_rows = _prefer_even_grid(rows, tile_rows, mult)
        grid = (pl.cdiv(rows, tile_rows),)        # partial last row-block is masked
        out2d = _clamp_call(x_flat.reshape(rows, _LANES), (tile_rows, _LANES), grid,
                            min_val=min_val, max_val=max_val,
                            vmem_limit_bytes=vmem_limit_bytes,
                            alias_input=alias_input)
        return out2d.reshape(orig_shape)

    # ---- Ragged path: size not a multiple of 128. ----
    # Run directly on the flat 1-D view with 128*sub-aligned 1-D blocks and let
    # Pallas mask the partial final block: no jnp.pad, no trailing slice, so the
    # op stays at 1 HBM read + 1 HBM write.
    quantum = _LANES * sub
    ragged_block_bytes = min(target_block_bytes, _RAGGED_MAX_BLOCK_BYTES)
    if total <= quantum:
        tile_elems = total                        # block == full array (legal)
    else:
        desired = min(max(quantum, ragged_block_bytes // itemsize),
                      pl.cdiv(total, 2))          # >=2 steps when possible
        tile_elems = max(quantum, (desired // quantum) * quantum)
        tile_elems = _prefer_even_grid(total, tile_elems, quantum)
    grid = (pl.cdiv(total, tile_elems),)
    out1d = _clamp_call(x_flat, (tile_elems,), grid,
                        min_val=min_val, max_val=max_val,
                        vmem_limit_bytes=vmem_limit_bytes,
                        alias_input=alias_input)
    return out1d.reshape(orig_shape)


class Clamp:
    """Drop-in analogue of the PyTorch module."""

    def __init__(self, min=0, max=1):
        self.min, self.max = min, max

    def __call__(self, x):
        return clamp_pallas(x, self.min, self.max)


if __name__ == "__main__":
    key = jax.random.PRNGKey(0)
    k0, k1, k2, k3 = jax.random.split(key, 4)

    # (1) NCHW input matching the PyTorch module; force the Pallas path
    #     (aligned 2-D path: 2048 elems -> rows=16, 2 grid steps).
    x = jax.random.normal(k0, (2, 4, 16, 16), dtype=jnp.float32) * 2.0
    y = clamp_pallas(x, 0.0, 1.0, pallas_min_elems=0)
    jax.block_until_ready(y)
    assert y.shape == x.shape and y.dtype == x.dtype
    assert jnp.allclose(y, jnp.clip(x, 0.0, 1.0)), "mismatch (aligned path)"

    # (2) Ragged size (not a multiple of 128) -> 1-D blocks with a masked
    #     partial final block (no pad / no slice).
    x_ragged = jax.random.normal(k1, (3, 5, 7, 13), dtype=jnp.float32) * 3.0
    y_ragged = clamp_pallas(x_ragged, 0.0, 1.0, pallas_min_elems=0)
    jax.block_until_ready(y_ragged)
    assert y_ragged.shape == x_ragged.shape
    assert jnp.allclose(y_ragged, jnp.clip(x_ragged, 0.0, 1.0)), "mismatch (ragged)"

    # (3) bf16 input -> dtype-aware (16-sublane) tiling on the aligned path.
    x_bf16 = (jax.random.normal(k2, (2, 4, 16, 16), dtype=jnp.float32) * 2.0
              ).astype(jnp.bfloat16)
    y_bf16 = clamp_pallas(x_bf16, 0.0, 1.0, pallas_min_elems=0)
    jax.block_until_ready(y_bf16)
    assert y_bf16.dtype == jnp.bfloat16
    assert jnp.array_equal(y_bf16, jnp.clip(x_bf16, 0.0, 1.0)), "mismatch (bf16)"

    # (4) Aligned path with a partial (masked) last row-block and the
    #     even-grid nudge (rows=120 -> tile 32 -> 4 grid steps).
    x_tail = jax.random.normal(k3, (1, 3, 40, 128), dtype=jnp.float32) * 2.0
    y_tail = clamp_pallas(x_tail, 0.0, 1.0, pallas_min_elems=0)
    jax.block_until_ready(y_tail)
    assert jnp.allclose(y_tail, jnp.clip(x_tail, 0.0, 1.0)), "mismatch (masked rows)"

    # (5) Default small-input bypass via the module-style wrapper.
    y_bypass = Clamp(0, 1)(x)
    assert jnp.allclose(y_bypass, jnp.clip(x, 0.0, 1.0)), "mismatch (bypass)"

    print("KERNEL_OK")
</pallas_src>

<mosaic_0001>
module attributes {stable_mosaic.version = 11 : i64} {
  func.func @_clamp_kernel(%arg0: i32, %arg1: memref<8x128xf32, #tpu.memory_space<vmem>>, %arg2: memref<8x128xf32, #tpu.memory_space<vmem>>) attributes {dimension_semantics = [#tpu.dimension_semantics<parallel>], iteration_bounds = array<i64: 2>, scalar_prefetch = 0 : i64, scratch_operands = 0 : i64, tpu.core_type = #tpu.core_type<tc>, window_params = [{transform_indices = @transform_0, window_bounds = array<i64: 8, 128>}, {transform_indices = @transform_1, window_bounds = array<i64: 8, 128>}]} {
    %c0 = arith.constant 0 : index
    %c0_0 = arith.constant 0 : index
    %0 = vector.load %arg1[%c0, %c0_0] : memref<8x128xf32, #tpu.memory_space<vmem>>, vector<8x128xf32>
    %cst = arith.constant 0.000000e+00 : f32
    %cst_1 = arith.constant 1.000000e+00 : f32
    %1 = vector.broadcast %cst : f32 to vector<8x128xf32>
    %2 = arith.maximumf %1, %0 : vector<8x128xf32>
    %3 = vector.broadcast %cst_1 : f32 to vector<8x128xf32>
    %4 = arith.minimumf %3, %2 : vector<8x128xf32>
    %c0_2 = arith.constant 0 : index
    %c0_3 = arith.constant 0 : index
    %5 = vector.load %arg2[%c0_2, %c0_3] : memref<8x128xf32, #tpu.memory_space<vmem>>, vector<8x128xf32>
    tpu.vector_store %arg2[%c0_2, %c0_3], %4 {strides = array<i32>} : memref<8x128xf32, #tpu.memory_space<vmem>>, vector<8x128xf32>,
    return
  }
  func.func @transform_0(%arg0: i32) -> (i32, i32) {
    %c0_i32 = arith.constant 0 : i32
    %c0_i32_0 = arith.constant 0 : i32
    return %arg0, %c0_i32 : i32, i32
  }
  func.func @transform_1(%arg0: i32) -> (i32, i32) {
    %c0_i32 = arith.constant 0 : i32
    %c0_i32_0 = arith.constant 0 : i32
    return %arg0, %c0_i32 : i32, i32
  }
}

</mosaic_0001>

<llo_original>
// kernel: tpu_custom_call.1
$region0: #{tpu_custom_call.1}
  #allocation0 [shape = 'u32[]', space=smem, size = 0x4, offset = 0x4, fixed_abs, tag = 'smem constant byte address 0x4 - core index']
  #allocation1 [shape = 'u32[144,128]{1,0:T(1,128)}', space=vmem, size = 0x12000, scoped, tag = 'internal scratch']
  %s0 = inlined_call_operand.hbm [shape: f32[16,128], index: 0, kind: input, shape index: {}, may-alias: {0,1}]
  %s1 = inlined_call_operand.hbm [shape: f32[16,128], index: 1, kind: output, shape index: {}, may-alias: {0,1}]
  %s2 = sld [smem:[#allocation0]]
  $region41: #{tpu_custom_call.1} parent=0
    _
  %s4 = ssub.s32 1, %s2
  %s5 = scalar_select 0, %s4, %s2
  $region1: #{tpu_custom_call.1} parent=0
    #allocation2 [shape = 'u8[8192]{0}', space=vmem, size = 0x2000, scoped, tag = 'input window, operand 0']
    #allocation3 [shape = 's32[2]{0}', space=sflag, size = 0x8, scoped, tag = 'scoped memory for tpu_custom_call.1']
    #allocation4 [shape = 's32[2]{0}', space=sflag, size = 0x8, scoped, tag = 'scoped memory for tpu_custom_call.1']
    #allocation5 [shape = 'u8[8192]{0}', space=vmem, size = 0x2000, scoped, tag = 'output window, operand 0']
    %6 = vsyncpa [#allocation3], 0
    %s7 = scalar_lea.sflag [#allocation3], 1
    %8 = vsyncpa %s7, 0
    %9 = vsyncpa [#allocation4], 0
    %s10 = scalar_lea.sflag [#allocation4], 1
    %11 = vsyncpa %s10, 0
    loop: start=0, step=1, limit=4
    $region2: #{tpu_custom_call.1} parent=1 // loop_pre_header
      _
    $region3: #{tpu_custom_call.1} parent=1 // loop_header
      %s13 = sphi 0, %s17
      %p14 = scmp.ge.s32.totalorder %s13, 4
      %s23 = sphi 0, %s25
      %s26 = sphi 0, %s23
      %s27 = sphi 0, %s26
      %s43 = sphi 0, %s27
      %s49 = sphi 0, %s51
      %s52 = sphi 0, %s49
      %s53 = sphi 0, %s52
      %s69 = sphi 0, %s53
    $region4: #{tpu_custom_call.1} parent=1 // loop_header_branch
      %16 = sbr.rel (%p14) target = $region8
    $region5: #{tpu_custom_call.1} parent=1 // loop_body
      %s18 = ssub.s32 %s13, 1
      %s19 = ssub.s32 %s13, 2
      %s20 = sadd.s32 %s13, 1
      %s21 = ssub.s32 %s13, %s20
      %p22 = scmp.eq.s32.totalorder %s21, 0
      %s24 = sadd.s32 %s23, 1
      %s25 = scalar_select %p22, %s23, %s24
      %p28 = pneg %p22
      %p29 = scmp.eq.s32.totalorder %s13, 1
      %p30 = por %p28, %p29
      %p31 = scmp.ne.s32.totalorder %s23, %s26
      %p32 = scmp.eq.s32.totalorder %s13, 0
      %p33 = por %p31, %p32
      %p34 = scmp.ne.s32.totalorder %s23, %s26
      %p35 = scmp.eq.s32.totalorder %s18, 1
      %p36 = por %p34, %p35
      %p37 = scmp.ne.s32.totalorder %s26, %s27
      %p38 = scmp.eq.s32.totalorder %s18, 0
      %p39 = por %p37, %p38
      %p40 = scmp.ne.s32.totalorder %s26, %s27
      %p41 = scmp.eq.s32.totalorder %s19, 1
      %p42 = por %p40, %p41
      %p44 = scmp.ne.s32.totalorder %s27, %s43
      %p45 = scmp.eq.s32.totalorder %s19, 0
      %p46 = por %p44, %p45
      %s47 = ssub.s32 %s13, %s20
      %p48 = scmp.eq.s32.totalorder %s47, 0
      %s50 = sadd.s32 %s49, 1
      %s51 = scalar_select %p48, %s49, %s50
      %p54 = pneg %p48
      %p55 = scmp.eq.s32.totalorder %s13, 1
      %p56 = por %p54, %p55
      %p57 = scmp.ne.s32.totalorder %s49, %s52
      %p58 = scmp.eq.s32.totalorder %s13, 0
      %p59 = por %p57, %p58
      %p60 = scmp.ne.s32.totalorder %s49, %s52
      %p61 = scmp.eq.s32.totalorder %s18, 1
      %p62 = por %p60, %p61
      %p63 = scmp.ne.s32.totalorder %s52, %s53
      %p64 = scmp.eq.s32.totalorder %s18, 0
      %p65 = por %p63, %p64
      %p66 = scmp.ne.s32.totalorder %s52, %s53
      %p67 = scmp.eq.s32.totalorder %s19, 1
      %p68 = por %p66, %p67
      %p70 = scmp.ne.s32.totalorder %s53, %s69
      %p71 = scmp.eq.s32.totalorder %s19, 0
      %p72 = por %p70, %p71
      %p73 = scmp.le.s32.totalorder 1, %s13
      %p74 = scmp.lt.s32.totalorder %s13, 3
      %p75 = pnand %p73, %p74
      %p76 = pneg %p75
      // Predicated region
      $region9: #{tpu_custom_call.1} parent=5 // pred_check
        _
      $region10: #{tpu_custom_call.1} parent=5 // pred_check_branch
        %78 = sbr.rel (%p75) target = $region12
      $region11: #{tpu_custom_call.1} parent=5 // pred_region
        %s79 = ssub.s32 %s13, 1
      $region12: #{tpu_custom_call.1} parent=5 // pred_fallthru
        _
      %p80 = scmp.lt.s32.totalorder %s13, 2
      // Predicated region
      $region13: #{tpu_custom_call.1} parent=5 // pred_check
        %p81 = pneg %p80
      $region14: #{tpu_custom_call.1} parent=5 // pred_check_branch
        %83 = sbr.rel (%p81) target = $region16
      $region15: #{tpu_custom_call.1} parent=5 // pred_region
        // Predicated region
        $region17: #{tpu_custom_call.1} parent=15 // pred_check
          %p84 = pneg %p33
        $region18: #{tpu_custom_call.1} parent=15 // pred_check_branch
          %86 = sbr.rel (%p84) target = $region20
        $region19: #{tpu_custom_call.1} parent=15 // pred_region
          %s87 = sand.u32 %s23, 1
          %s88 = scalar_lea.sflag [#allocation3], %s87
          %s89 = sand.u32 %s23, 1
          %s90 = smul.addr %s89, 8
          %s91 = scalar_lea.vmem [#allocation2], %s90
          %s93 = ssub.s32 128, 128
          %94 = vsyncadd %s88, %s93
          %s95 = smul.addr %s13, 128
          %s96 = scalar_lea.hbm %s0, %s95
          %s98 = sshll.u32 %s91, 4
          %s99 = int_to_ptr.vmem [resolvable:$true] %s98
          %101 = dma.hbm_to_vmem [thread:$0]  %s96, 128, %s99, %s88
        $region20: #{tpu_custom_call.1} parent=15 // pred_fallthru
          _
      $region16: #{tpu_custom_call.1} parent=5 // pred_fallthru
        _
      %p102 = scmp.le.s32.totalorder 1, %s13
      %p103 = scmp.lt.s32.totalorder %s13, 3
      %p104 = pnand %p102, %p103
      %p105 = pneg %p104
      // Predicated region
      $region21: #{tpu_custom_call.1} parent=5 // pred_check
        _
      $region22: #{tpu_custom_call.1} parent=5 // pred_check_branch
        %107 = sbr.rel (%p104) target = $region24
      $region23: #{tpu_custom_call.1} parent=5 // pred_region
        %s108 = ssub.s32 %s13, 1
        %s109 = sand.u32 %s26, 1
        %s110 = scalar_lea.sflag [#allocation3], %s109
        %s111 = sand.u32 %s26, 1
        %s112 = smul.addr %s111, 8
        %s113 = scalar_lea.vmem [#allocation2], %s112
        // Predicated region
        $region25: #{tpu_custom_call.1} parent=23 // pred_check
          %p114 = pneg %p39
        $region26: #{tpu_custom_call.1} parent=23 // pred_check_branch
          %116 = sbr.rel (%p114) target = $region28
        $region27: #{tpu_custom_call.1} parent=23 // pred_region
          %117 = dma.done %s110, 128
        $region28: #{tpu_custom_call.1} parent=23 // pred_fallthru
          _
        %s118 = sand.u32 %s26, 1
        %s119 = scalar_lea.sflag [#allocation3], %s118
        %s120 = sand.u32 %s26, 1
        %s121 = smul.addr %s120, 8
        %s122 = scalar_lea.vmem [#allocation2], %s121
        %p123 = pneg %p39
        %p124 = pneg %p36
        %p125 = pneg %p65
        %p126 = pneg %p62
        %s127 = sand.u32 %s52, 1
        %s128 = scalar_lea.sflag [#allocation4], %s127
        %s129 = sand.u32 %s52, 1
        %s130 = smul.addr %s129, 8
        %s131 = scalar_lea.vmem [#allocation5], %s130
        %v132 = vld [vmem:[%s113] sm:$0xff]
        %v133 = vmax.f32 %v132, 0.0
        %v134 = vmin.f32 %v133, 1.0
        %135 = vst [vmem:[%s131] sm:$0xff] %v134
        %s136 = sand.u32 %s52, 1
        %s137 = scalar_lea.sflag [#allocation4], %s136
        %s138 = sand.u32 %s52, 1
        %s139 = smul.addr %s138, 8
        %s140 = scalar_lea.vmem [#allocation5], %s139
        // Predicated region
        $region29: #{tpu_custom_call.1} parent=23 // pred_check
          %p141 = pneg %p62
        $region30: #{tpu_custom_call.1} parent=23 // pred_check_branch
          %143 = sbr.rel (%p141) target = $region32
        $region31: #{tpu_custom_call.1} parent=23 // pred_region
          %s145 = ssub.s32 128, 128
          %146 = vsyncadd %s137, %s145
          %s147 = smul.addr %s18, 128
          %s148 = scalar_lea.hbm %s1, %s147
          %s150 = sshll.u32 %s140, 4
          %s151 = int_to_ptr.vmem [resolvable:$true] %s150
          %153 = dma.vmem_to_hbm [thread:$0]  %s151, 128, %s148, %s137
        $region32: #{tpu_custom_call.1} parent=23 // pred_fallthru
          _
      $region24: #{tpu_custom_call.1} parent=5 // pred_fallthru
        _
      %p154 = scmp.le.s32.totalorder 2, %s13
      // Predicated region
      $region33: #{tpu_custom_call.1} parent=5 // pred_check
        %p155 = pneg %p154
      $region34: #{tpu_custom_call.1} parent=5 // pred_check_branch
        %157 = sbr.rel (%p155) target = $region36
      $region35: #{tpu_custom_call.1} parent=5 // pred_region
        %s158 = ssub.s32 %s13, 2
        // Predicated region
        $region37: #{tpu_custom_call.1} parent=35 // pred_check
          %p159 = pneg %p68
        $region38: #{tpu_custom_call.1} parent=35 // pred_check_branch
          %161 = sbr.rel (%p159) target = $region40
        $region39: #{tpu_custom_call.1} parent=35 // pred_region
          %s162 = sand.u32 %s53, 1
          %s163 = scalar_lea.sflag [#allocation4], %s162
          %s164 = sand.u32 %s53, 1
          %s165 = smul.addr %s164, 8
          %s166 = scalar_lea.vmem [#allocation5], %s165
          %167 = dma.done %s163, 128
        $region40: #{tpu_custom_call.1} parent=35 // pred_fallthru
          _
      $region36: #{tpu_custom_call.1} parent=5 // pred_fallthru
        _
    $region6: #{tpu_custom_call.1} parent=1 // loop_footer
      %s17 = sadd.s32 1, %s13
    $region7: #{tpu_custom_call.1} parent=1 // loop_footer_branch
      %12 = sbr.rel target = $region3
    $region8: #{tpu_custom_call.1} parent=1 // loop_exit
      _
    %168 = vsyncpa [#allocation3], 1
    %s169 = scalar_lea.sflag [#allocation3], 1
    %170 = vsyncpa %s169, 1
    %171 = vsyncpa [#allocation4], 1
    %s172 = scalar_lea.sflag [#allocation4], 1
    %173 = vsyncpa %s172, 1

</llo_original>
